<compile_context>
chip_gen: v7x
topology: tpu7x:2x2x1
jax: 0.10.0
libtpu: 0.0.40
codegen_flags: <defaults>
</compile_context>

<pallas_src>
import math

import numpy as np
import jax
import jax.numpy as jnp
from jax.experimental import pallas as pl
from jax.experimental.pallas import tpu as pltpu


_MIB = 1024 * 1024
_VMEM_BUDGET = 26 * _MIB   # keep tiles well under scoped-VMEM limits on all gens


# ---------------------------------------------------------------------------
# helpers
# ---------------------------------------------------------------------------
def _round_up(x, m):
    return ((x + m - 1) // m) * m


def _node_padding(n):
    """Padded node count.  Keep a single big tile when possible; otherwise pad
    UP to a multiple of 512 so phase-2 tiles stay 512 wide (never shrink to
    128 just because N_p has awkward divisors)."""
    n128 = _round_up(n, 128)
    if n128 <= 1536:
        return n128
    return _round_up(n, 512)


def _tile_candidates(n_p, cap):
    """Valid tile sizes: multiples of 128 that divide n_p, capped at `cap`."""
    cands = [t for t in range(128, min(n_p, cap) + 1, 128) if n_p % t == 0]
    return cands if cands else [n_p]


def _vmem_limit(footprint_bytes):
    """Explicit scoped-VMEM request: >=32 MiB, <=60 MiB (v7x physical is 64)."""
    return int(min(max(footprint_bytes + 6 * _MIB, 32 * _MIB), 60 * _MIB))


def prepare_adj(adj, *, compute_dtype=jnp.bfloat16):
    """Pad + cast the (reused) adjacency once, outside the per-layer call."""
    n = adj.shape[0]
    n_p = _node_padding(n)
    cdt = jnp.dtype(compute_dtype)
    if adj.shape == (n_p, n_p) and adj.dtype == cdt:
        return adj
    return jnp.zeros((n_p, n_p), cdt).at[:n, :n].set(adj.astype(cdt))


# ---------------------------------------------------------------------------
# Phase 1: support2d[:, b*Fout_p:(b+1)*Fout_p] = x[b] @ W
# ---------------------------------------------------------------------------
def _support_kernel_direct(x_ref, w_ref, s_ref):
    # x_ref: (TS, Fin_p)   w_ref: (Fin_p, Fout_p)   s_ref: (TS, Fout_p)
    s_ref[...] = jnp.dot(x_ref[...], w_ref[...],
                         preferred_element_type=jnp.float32).astype(s_ref.dtype)


def _support_kernel_kloop(x_ref, w_ref, s_ref, acc_ref):
    # Fallback when the full weight does not fit VMEM double-buffered.
    k = pl.program_id(2)

    @pl.when(k == 0)
    def _():
        acc_ref[...] = jnp.zeros_like(acc_ref)

    acc_ref[...] += jnp.dot(x_ref[...], w_ref[...],
                            preferred_element_type=jnp.float32)

    @pl.when(k == pl.num_programs(2) - 1)
    def _():
        s_ref[...] = acc_ref[...].astype(s_ref.dtype)


# ---------------------------------------------------------------------------
# Phase 2: out2d = adj @ support2d (+ bias), batch folded into columns
# ---------------------------------------------------------------------------
def _aggregate_kernel(adj_ref, s_ref, o_ref, acc_ref):
    # adj_ref: (TM, TK)  s_ref: (TK, B*Fout_p)  o_ref: (TM, B*Fout_p)
    k = pl.program_id(1)

    @pl.when(k == 0)
    def _():
        acc_ref[...] = jnp.zeros_like(acc_ref)

    acc_ref[...] += jnp.dot(adj_ref[...], s_ref[...],
                            preferred_element_type=jnp.float32)

    @pl.when(k == pl.num_programs(1) - 1)
    def _():
        o_ref[...] = acc_ref[...].astype(o_ref.dtype)


def _aggregate_kernel_bias(adj_ref, s_ref, b_ref, o_ref, acc_ref):
    k = pl.program_id(1)

    @pl.when(k == 0)
    def _():
        acc_ref[...] = jnp.zeros_like(acc_ref)

    acc_ref[...] += jnp.dot(adj_ref[...], s_ref[...],
                            preferred_element_type=jnp.float32)

    @pl.when(k == pl.num_programs(1) - 1)
    def _():
        o_ref[...] = (acc_ref[...] + b_ref[...]).astype(o_ref.dtype)


# ---------------------------------------------------------------------------
# wrapper
# ---------------------------------------------------------------------------
def graph_convolution(x, adj, weight, bias=None, *, compute_dtype=jnp.bfloat16):
    """Pallas GCN forward.

    x: [B, N, Fin], adj: [N, N] (or pre-padded via prepare_adj),
    weight: [Fin, Fout], bias: [1, 1, Fout] or None.
    compute_dtype: MXU input dtype (default bf16); accumulation is always f32.
    Returns [B, N, Fout] in x.dtype.
    """
    B, N, Fin = x.shape
    Fin_w, Fout = weight.shape
    assert Fin_w == Fin, "weight in_features mismatch"
    out_dtype = x.dtype
    cdt = jnp.dtype(compute_dtype) if compute_dtype is not None else jnp.dtype(x.dtype)
    csz = cdt.itemsize
    osz = jnp.dtype(out_dtype).itemsize

    N_p = _node_padding(N)
    Fin_p = _round_up(Fin, 128)
    Fout_p = _round_up(Fout, 128)
    cols = B * Fout_p                    # batch folded into matmul columns

    # ---- padded / cast inputs (adj may be pre-padded by the caller) -------
    if adj.ndim == 2 and adj.shape == (N_p, N_p):
        adj_p = adj if adj.dtype == cdt else adj.astype(cdt)
    else:
        assert adj.shape == (N, N), "adj must be [N,N] or pre-padded [N_p,N_p]"
        adj_p = jnp.zeros((N_p, N_p), cdt).at[:N, :N].set(adj.astype(cdt))

    if (N_p, Fin_p) == (N, Fin):
        x_p = x.astype(cdt)
    else:
        x_p = jnp.zeros((B, N_p, Fin_p), cdt).at[:, :N, :Fin].set(x.astype(cdt))

    if (Fin_p, Fout_p) == (Fin, Fout):
        w_p = weight.astype(cdt)
    else:
        w_p = jnp.zeros((Fin_p, Fout_p), cdt).at[:Fin, :Fout].set(weight.astype(cdt))

    # -------------------- phase 1: support2d = x @ W -----------------------
    ts_cands = _tile_candidates(N_p, cap=512)
    TS = ts_cands[-1]
    w_buf_bytes = 2 * Fin_p * Fout_p * csz
    use_direct = w_buf_bytes <= 12 * _MIB

    if use_direct:
        def p1_fp(ts):
            return 2 * (ts * Fin_p + ts * Fout_p) * csz + w_buf_bytes
    else:
        kf_cands = [t for t in range(128, Fin_p + 1, 128) if Fin_p % t == 0]
        TKF = max((t for t in kf_cands if 2 * t * Fout_p * csz <= 8 * _MIB),
                  default=kf_cands[0])

        def p1_fp(ts):
            return (2 * (ts * TKF + TKF * Fout_p + ts * Fout_p) * csz
                    + ts * Fout_p * 4)

    while p1_fp(TS) > _VMEM_BUDGET and TS > ts_cands[0]:
        TS = max(t for t in ts_cands if t < TS)

    p1_cost = pl.CostEstimate(
        flops=int(2 * B * N_p * Fin_p * Fout_p),
        transcendentals=0,
        bytes_accessed=int((x_p.size + w_p.size + N_p * cols) * csz))
    support_shape = jax.ShapeDtypeStruct((N_p, cols), cdt)

    if use_direct:
        support = pl.pallas_call(
            _support_kernel_direct,
            out_shape=support_shape,
            grid_spec=pltpu.PrefetchScalarGridSpec(
                num_scalar_prefetch=0,
                grid=(B, N_p // TS),
                in_specs=[
                    pl.BlockSpec((None, TS, Fin_p), lambda b, i: (b, i, 0)),
                    # constant block index -> weight DMA'd once (pipeline-invariant)
                    pl.BlockSpec((Fin_p, Fout_p), lambda b, i: (0, 0)),
                ],
                out_specs=pl.BlockSpec((TS, Fout_p), lambda b, i: (i, b)),
            ),
            compiler_params=pltpu.CompilerParams(
                dimension_semantics=("parallel", "parallel"),
                vmem_limit_bytes=_vmem_limit(p1_fp(TS))),
            cost_estimate=p1_cost,
        )(x_p, w_p)
    else:
        support = pl.pallas_call(
            _support_kernel_kloop,
            out_shape=support_shape,
            grid_spec=pltpu.PrefetchScalarGridSpec(
                num_scalar_prefetch=0,
                grid=(B, N_p // TS, Fin_p // TKF),
                in_specs=[
                    pl.BlockSpec((None, TS, TKF), lambda b, i, k: (b, i, k)),
                    pl.BlockSpec((TKF, Fout_p), lambda b, i, k: (k, 0)),
                ],
                out_specs=pl.BlockSpec((TS, Fout_p), lambda b, i, k: (i, b)),
                scratch_shapes=[pltpu.VMEM((TS, Fout_p), jnp.float32)],
            ),
            compiler_params=pltpu.CompilerParams(
                dimension_semantics=("parallel", "parallel", "arbitrary"),
                vmem_limit_bytes=_vmem_limit(p1_fp(TS))),
            cost_estimate=p1_cost,
        )(x_p, w_p)

    # -------------------- phase 2: out2d = adj @ support2d (+ bias) --------
    tm_cands = _tile_candidates(N_p, cap=1536)
    TM = TK = tm_cands[-1]

    def p2_fp(tm, tk):
        return (2 * tm * tk * csz            # adj tiles (double-buffered)
                + 2 * tk * cols * csz        # support tiles
                + 2 * tm * cols * osz        # output tiles
                + tm * cols * 4              # f32 accumulator
                + 2 * cols * 4)              # bias

    while p2_fp(TM, TK) > _VMEM_BUDGET and (TM > tm_cands[0] or TK > tm_cands[0]):
        if TK >= TM and TK > tm_cands[0]:
            TK = max(t for t in tm_cands if t < TK)
        elif TM > tm_cands[0]:
            TM = max(t for t in tm_cands if t < TM)
        else:
            break

    p2_cost = pl.CostEstimate(
        flops=int(2 * N_p * N_p * cols),
        transcendentals=0,
        bytes_accessed=int(N_p * N_p * csz + N_p * cols * csz + N_p * cols * osz))

    if bias is not None:
        b_p = jnp.zeros((1, Fout_p), jnp.float32).at[:, :Fout].set(
            jnp.reshape(bias, (1, Fout)).astype(jnp.float32))
        b_cols = jnp.tile(b_p, (1, B))       # matches the batch-folded column layout
        kernel = _aggregate_kernel_bias
        in_specs = [
            pl.BlockSpec((TM, TK), lambda i, k: (i, k)),
            pl.BlockSpec((TK, cols), lambda i, k: (k, 0)),
            pl.BlockSpec((1, cols), lambda i, k: (0, 0)),
        ]
        inputs = (adj_p, support, b_cols)
    else:
        kernel = _aggregate_kernel
        in_specs = [
            pl.BlockSpec((TM, TK), lambda i, k: (i, k)),
            pl.BlockSpec((TK, cols), lambda i, k: (k, 0)),
        ]
        inputs = (adj_p, support)

    out2d = pl.pallas_call(
        kernel,
        out_shape=jax.ShapeDtypeStruct((N_p, cols), out_dtype),
        grid_spec=pltpu.PrefetchScalarGridSpec(
            num_scalar_prefetch=0,
            grid=(N_p // TM, N_p // TK),
            in_specs=in_specs,
            out_specs=pl.BlockSpec((TM, cols), lambda i, k: (i, 0)),
            scratch_shapes=[pltpu.VMEM((TM, cols), jnp.float32)],
        ),
        compiler_params=pltpu.CompilerParams(
            dimension_semantics=("parallel", "arbitrary"),
            vmem_limit_bytes=_vmem_limit(p2_fp(TM, TK))),
        cost_estimate=p2_cost,
    )(*inputs)

    # Unfold batch ((N_p, B*Fout_p) -> (B, N_p, Fout_p)) and strip padding.
    out = out2d.reshape(N_p, B, Fout_p).transpose(1, 0, 2)
    return out[:, :N, :Fout]


# ---------------------------------------------------------------------------
# parameter init (mirror of GraphConvolution.reset_parameters)
# ---------------------------------------------------------------------------
def init_params(key, in_features, out_features, use_bias=True):
    stdv = 1.0 / math.sqrt(out_features)
    kw, kb = jax.random.split(key)
    weight = jax.random.uniform(
        kw, (in_features, out_features), jnp.float32, minval=-stdv, maxval=stdv)
    if use_bias:
        bias = jax.random.uniform(
            kb, (1, 1, out_features), jnp.float32, minval=-stdv, maxval=stdv)
    else:
        bias = None
    return weight, bias


if __name__ == "__main__":
    key = jax.random.PRNGKey(0)
    k_x, k_adj, k_p = jax.random.split(key, 3)

    B, N, Fin, Fout = 2, 8, 16, 32

    x = jax.random.normal(k_x, (B, N, Fin), jnp.float32)
    # Row-normalized dense adjacency (deterministic), as a GCN typically uses.
    adj_raw = jax.random.uniform(k_adj, (N, N), jnp.float32)
    adj = adj_raw / jnp.sum(adj_raw, axis=-1, keepdims=True)

    weight, bias = init_params(k_p, Fin, Fout, use_bias=True)

    ref = jnp.matmul(adj, jnp.matmul(x, weight)) + bias
    ref_nb = jnp.matmul(adj, jnp.matmul(x, weight))

    # Default bf16 compute path (f32 accumulation) — fast path, looser tolerance.
    out = jax.block_until_ready(graph_convolution(x, adj, weight, bias))
    assert out.shape == (B, N, Fout)
    assert jnp.allclose(out, ref, atol=3e-2, rtol=3e-2)

    # Pre-padded / pre-cast adjacency (reused across layers) + module-default bias=False.
    adj_prepped = prepare_adj(adj, compute_dtype=jnp.bfloat16)
    out_nb = jax.block_until_ready(graph_convolution(x, adj_prepped, weight, bias=None))
    assert jnp.allclose(out_nb, ref_nb, atol=3e-2, rtol=3e-2)

    # Exact f32 compute path.
    out_f32 = jax.block_until_ready(
        graph_convolution(x, adj, weight, bias, compute_dtype=jnp.float32))
    assert jnp.allclose(out_f32, ref, atol=1e-5, rtol=1e-5)

    print("KERNEL_OK")
</pallas_src>

<mosaic_0001>
module attributes {stable_mosaic.version = 11 : i64} {
  func.func @_support_kernel_direct(%arg0: i32, %arg1: i32, %arg2: memref<1x128x128xbf16, #tpu.memory_space<vmem>>, %arg3: memref<128x128xbf16, #tpu.memory_space<vmem>>, %arg4: memref<128x128xbf16, #tpu.memory_space<vmem>>) attributes {dimension_semantics = [#tpu.dimension_semantics<parallel>, #tpu.dimension_semantics<parallel>], iteration_bounds = array<i64: 2, 1>, scalar_prefetch = 0 : i64, scratch_operands = 0 : i64, tpu.core_type = #tpu.core_type<tc>, window_params = [{transform_indices = @transform_0, window_bounds = array<i64: 1, 128, 128>}, {pipeline_mode = #tpu.pipeline_mode<synchronous>, transform_indices = @transform_1, window_bounds = array<i64: 128, 128>}, {transform_indices = @transform_2, window_bounds = array<i64: 128, 128>}]} {
    %c0 = arith.constant 0 : index
    %c0_0 = arith.constant 0 : index
    %c0_1 = arith.constant 0 : index
    %0 = vector.load %arg2[%c0, %c0_0, %c0_1] : memref<1x128x128xbf16, #tpu.memory_space<vmem>>, vector<1x128x128xbf16>
    %1 = vector.shape_cast %0 : vector<1x128x128xbf16> to vector<128x128xbf16>
    %c0_2 = arith.constant 0 : index
    %c0_3 = arith.constant 0 : index
    %2 = vector.load %arg3[%c0_2, %c0_3] : memref<128x128xbf16, #tpu.memory_space<vmem>>, vector<128x128xbf16>
    %cst = arith.constant dense<0.000000e+00> : vector<128x128xf32>
    %3 = tpu.matmul %1, %2, %cst {dimension_numbers = #tpu.dot_dimension_numbers<[1], [0], [0], [1], [0, 0, 1, 1], [], []>} : vector<128x128xbf16>, vector<128x128xbf16>, vector<128x128xf32> -> vector<128x128xf32>
    %4 = arith.truncf %3 : vector<128x128xf32> to vector<128x128xbf16>
    %c0_4 = arith.constant 0 : index
    %c0_5 = arith.constant 0 : index
    %5 = vector.load %arg4[%c0_4, %c0_5] : memref<128x128xbf16, #tpu.memory_space<vmem>>, vector<128x128xbf16>
    tpu.vector_store %arg4[%c0_4, %c0_5], %4 {strides = array<i32>} : memref<128x128xbf16, #tpu.memory_space<vmem>>, vector<128x128xbf16>,
    return
  }
  func.func @transform_0(%arg0: i32, %arg1: i32) -> (i32, i32, i32) {
    %c0_i32 = arith.constant 0 : i32
    %c0_i32_0 = arith.constant 0 : i32
    return %arg0, %arg1, %c0_i32 : i32, i32, i32
  }
  func.func @transform_1(%arg0: i32, %arg1: i32) -> (i32, i32) {
    %c0_i32 = arith.constant 0 : i32
    %c0_i32_0 = arith.constant 0 : i32
    %c0_i32_1 = arith.constant 0 : i32
    return %c0_i32, %c0_i32_0 : i32, i32
  }
  func.func @transform_2(%arg0: i32, %arg1: i32) -> (i32, i32) {
    %c0_i32 = arith.constant 0 : i32
    return %arg1, %arg0 : i32, i32
  }
}

</mosaic_0001>

<llo_original>
// kernel: tpu_custom_call.1
$region0: #{tpu_custom_call.1}
  #allocation0 [shape = 'u32[]', space=smem, size = 0x4, offset = 0x4, fixed_abs, tag = 'smem constant byte address 0x4 - core index']
  #allocation1 [shape = 'u32[144,128]{1,0:T(1,128)}', space=vmem, size = 0x12000, scoped, tag = 'internal scratch']
  %s0 = inlined_call_operand.hbm [shape: bf16[2,128,128], index: 0, kind: input, shape index: {}]
  %s1 = inlined_call_operand.hbm [shape: bf16[128,128], index: 1, kind: input, shape index: {}]
  %s2 = inlined_call_operand.hbm [shape: bf16[128,256], index: 2, kind: output, shape index: {}]
  %s3 = sld [smem:[#allocation0]]
  $region49: #{tpu_custom_call.1} parent=0
    _
  %s5 = ssub.s32 1, %s3
  %s6 = scalar_select 0, %s5, %s3
  $region1: #{tpu_custom_call.1} parent=0
    #allocation2 [shape = 'u8[65536]{0}', space=vmem, size = 0x10000, scoped, tag = 'input window, operand 0']
    #allocation3 [shape = 's32[2]{0}', space=sflag, size = 0x8, scoped, tag = 'scoped memory for tpu_custom_call.1']
    #allocation4 [shape = 's32[2]{0}', space=sflag, size = 0x8, scoped, tag = 'scoped memory for tpu_custom_call.1']
    #allocation5 [shape = 'u8[32768]{0}', space=vmem, size = 0x8000, scoped, tag = 'input window, operand 1, single buffered']
    #allocation6 [shape = 's32[1]{0}', space=sflag, size = 0x4, scoped, tag = 'scoped memory for tpu_custom_call.1']
    #allocation7 [shape = 'u8[65536]{0}', space=vmem, size = 0x10000, scoped, tag = 'output window, operand 0']
    %7 = vsyncpa [#allocation3], 0
    %s8 = scalar_lea.sflag [#allocation3], 1
    %9 = vsyncpa %s8, 0
    %10 = vsyncpa [#allocation6], 0
    %11 = vsyncpa [#allocation4], 0
    %s12 = scalar_lea.sflag [#allocation4], 1
    %13 = vsyncpa %s12, 0
    loop: start=0, step=1, limit=4
    $region2: #{tpu_custom_call.1} parent=1 // loop_pre_header
      _
    $region3: #{tpu_custom_call.1} parent=1 // loop_header
      %s15 = sphi 0, %s19
      %p16 = scmp.ge.s32.totalorder %s15, 4
      %s22 = sphi 0, %s34
      %s23 = sphi 0, %s30
      %s24 = sphi 0, %s22
      %s25 = sphi 0, %s23
      %s26 = sphi 0, %s24
      %s27 = sphi 0, %s25
      %s39 = sphi 0, %s41
      %s42 = sphi 0, %s39
      %s43 = sphi 0, %s42
      %s59 = sphi 0, %s43
      %s63 = sphi 0, %s63
      %s65 = sphi 0, %s63
      %s66 = sphi 0, %s65
      %s80 = sphi 0, %s66
      %s88 = sphi 0, %s90
      %s91 = sphi 0, %s88
      %s92 = sphi 0, %s91
      %s108 = sphi 0, %s92
    $region4: #{tpu_custom_call.1} parent=1 // loop_header_branch
      %18 = sbr.rel (%p16) target = $region8
    $region5: #{tpu_custom_call.1} parent=1 // loop_body
      %s20 = ssub.s32 %s15, 1
      %s21 = ssub.s32 %s15, 2
      %s28 = sadd.s32 1, %s23
      %p29 = scmp.ge.s32.totalorder %s28, 1
      %s30 = scalar_select %p29, 0, %s28
      %s31 = sadd.s32 1, %s22
      %s32 = scalar_select %p29, %s31, %s22
      %p33 = scmp.ge.s32.totalorder %s32, 2
      %s34 = scalar_select %p33, 0, %s32
      %s35 = ssub.s32 %s22, %s34
      %s36 = ssub.s32 %s23, %s30
      %s37 = sor.u32 %s35, %s36
      %p38 = scmp.eq.s32.totalorder %s37, 0
      %s40 = sadd.s32 %s39, 1
      %s41 = scalar_select %p38, %s39, %s40
      %p44 = pneg %p38
      %p45 = scmp.eq.s32.totalorder %s15, 1
      %p46 = por %p44, %p45
      %p47 = scmp.ne.s32.totalorder %s39, %s42
      %p48 = scmp.eq.s32.totalorder %s15, 0
      %p49 = por %p47, %p48
      %p50 = scmp.ne.s32.totalorder %s39, %s42
      %p51 = scmp.eq.s32.totalorder %s20, 1
      %p52 = por %p50, %p51
      %p53 = scmp.ne.s32.totalorder %s42, %s43
      %p54 = scmp.eq.s32.totalorder %s20, 0
      %p55 = por %p53, %p54
      %p56 = scmp.ne.s32.totalorder %s42, %s43
      %p57 = scmp.eq.s32.totalorder %s21, 1
      %p58 = por %p56, %p57
      %p60 = scmp.ne.s32.totalorder %s43, %s59
      %p61 = scmp.eq.s32.totalorder %s21, 0
      %p62 = por %p60, %p61
      %s64 = sadd.s32 %s63, 1
      %p67 = scmp.eq.s32.totalorder %s15, 1
      %p68 = scmp.ne.s32.totalorder %s63, %s65
      %p69 = scmp.eq.s32.totalorder %s15, 0
      %p70 = por %p68, %p69
      %p71 = scmp.ne.s32.totalorder %s63, %s65
      %p72 = scmp.eq.s32.totalorder %s20, 1
      %p73 = por %p71, %p72
      %p74 = scmp.ne.s32.totalorder %s65, %s66
      %p75 = scmp.eq.s32.totalorder %s20, 0
      %p76 = por %p74, %p75
      %p77 = scmp.ne.s32.totalorder %s65, %s66
      %p78 = scmp.eq.s32.totalorder %s21, 1
      %p79 = por %p77, %p78
      %p81 = scmp.ne.s32.totalorder %s66, %s80
      %p82 = scmp.eq.s32.totalorder %s21, 0
      %p83 = por %p81, %p82
      %s84 = ssub.s32 %s23, %s30
      %s85 = ssub.s32 %s22, %s34
      %s86 = sor.u32 %s84, %s85
      %p87 = scmp.eq.s32.totalorder %s86, 0
      %s89 = sadd.s32 %s88, 1
      %s90 = scalar_select %p87, %s88, %s89
      %p93 = pneg %p87
      %p94 = scmp.eq.s32.totalorder %s15, 1
      %p95 = por %p93, %p94
      %p96 = scmp.ne.s32.totalorder %s88, %s91
      %p97 = scmp.eq.s32.totalorder %s15, 0
      %p98 = por %p96, %p97
      %p99 = scmp.ne.s32.totalorder %s88, %s91
      %p100 = scmp.eq.s32.totalorder %s20, 1
      %p101 = por %p99, %p100
      %p102 = scmp.ne.s32.totalorder %s91, %s92
      %p103 = scmp.eq.s32.totalorder %s20, 0
      %p104 = por %p102, %p103
      %p105 = scmp.ne.s32.totalorder %s91, %s92
      %p106 = scmp.eq.s32.totalorder %s21, 1
      %p107 = por %p105, %p106
      %p109 = scmp.ne.s32.totalorder %s92, %s108
      %p110 = scmp.eq.s32.totalorder %s21, 0
      %p111 = por %p109, %p110
      %p112 = scmp.le.s32.totalorder 1, %s15
      %p113 = scmp.lt.s32.totalorder %s15, 3
      %p114 = pnand %p112, %p113
      %p115 = pneg %p114
      // Predicated region
      $region9: #{tpu_custom_call.1} parent=5 // pred_check
        _
      $region10: #{tpu_custom_call.1} parent=5 // pred_check_branch
        %117 = sbr.rel (%p114) target = $region12
      $region11: #{tpu_custom_call.1} parent=5 // pred_region
        %s118 = ssub.s32 %s15, 1
        // Predicated region
        $region13: #{tpu_custom_call.1} parent=11 // pred_check
          %p119 = pneg %p76
        $region14: #{tpu_custom_call.1} parent=11 // pred_check_branch
          %121 = sbr.rel (%p119) target = $region16
        $region15: #{tpu_custom_call.1} parent=11 // pred_region
          %s123 = ssub.s32 1024, 1024
          %124 = vsyncadd [#allocation6], %s123
          %s125 = sshll.u32 [#allocation5], 4
          %s126 = int_to_ptr.vmem [resolvable:$true] %s125
          %131 = dma.hbm_to_vmem [thread:$0]  %s1, 1024, %s126, [#allocation6], 64, 64, 4
        $region16: #{tpu_custom_call.1} parent=11 // pred_fallthru
          _
      $region12: #{tpu_custom_call.1} parent=5 // pred_fallthru
        _
      %p132 = scmp.lt.s32.totalorder %s15, 2
      // Predicated region
      $region17: #{tpu_custom_call.1} parent=5 // pred_check
        %p133 = pneg %p132
      $region18: #{tpu_custom_call.1} parent=5 // pred_check_branch
        %135 = sbr.rel (%p133) target = $region20
      $region19: #{tpu_custom_call.1} parent=5 // pred_region
        // Predicated region
        $region21: #{tpu_custom_call.1} parent=19 // pred_check
          %p136 = pneg %p49
        $region22: #{tpu_custom_call.1} parent=19 // pred_check_branch
          %138 = sbr.rel (%p136) target = $region24
        $region23: #{tpu_custom_call.1} parent=19 // pred_region
          %s139 = sand.u32 %s39, 1
          %s140 = scalar_lea.sflag [#allocation3], %s139
          %s141 = sand.u32 %s39, 1
          %s142 = smul.addr %s141, 64
          %s143 = scalar_lea.vmem [#allocation2], %s142
          %s144 = smul.u32 16, %s23
          %s146 = ssub.s32 1024, 1024
          %147 = vsyncadd %s140, %s146
          %s148 = smul.addr %s22, 16
          %s149 = sadd.s32 %s144, %s148
          %s150 = smul.addr %s149, 64
          %s151 = scalar_lea.hbm %s0, %s150
          %s152 = sshll.u32 %s143, 4
          %s153 = int_to_ptr.vmem [resolvable:$true] %s152
          %158 = dma.hbm_to_vmem [thread:$0]  %s151, 1024, %s153, %s140, 64, 64, 4
        $region24: #{tpu_custom_call.1} parent=19 // pred_fallthru
          _
      $region20: #{tpu_custom_call.1} parent=5 // pred_fallthru
        _
      %p159 = scmp.le.s32.totalorder 1, %s15
      %p160 = scmp.lt.s32.totalorder %s15, 3
      %p161 = pnand %p159, %p160
      %p162 = pneg %p161
      // Predicated region
      $region25: #{tpu_custom_call.1} parent=5 // pred_check
        _
      $region26: #{tpu_custom_call.1} parent=5 // pred_check_branch
        %164 = sbr.rel (%p161) target = $region28
      $region27: #{tpu_custom_call.1} parent=5 // pred_region
        %s165 = ssub.s32 %s15, 1
        %s166 = sand.u32 %s42, 1
        %s167 = scalar_lea.sflag [#allocation3], %s166
        %s168 = sand.u32 %s42, 1
        %s169 = smul.addr %s168, 64
        %s170 = scalar_lea.vmem [#allocation2], %s169
        // Predicated region
        $region29: #{tpu_custom_call.1} parent=27 // pred_check
          %p171 = pneg %p55
        $region30: #{tpu_custom_call.1} parent=27 // pred_check_branch
          %173 = sbr.rel (%p171) target = $region32
        $region31: #{tpu_custom_call.1} parent=27 // pred_region
          %174 = dma.done %s167, 1024
        $region32: #{tpu_custom_call.1} parent=27 // pred_fallthru
          _
        // Predicated region
        $region33: #{tpu_custom_call.1} parent=27 // pred_check
          %p175 = pneg %p76
        $region34: #{tpu_custom_call.1} parent=27 // pred_check_branch
          %177 = sbr.rel (%p175) target = $region36
        $region35: #{tpu_custom_call.1} parent=27 // pred_region
          %178 = dma.done [#allocation6], 1024
        $region36: #{tpu_custom_call.1} parent=27 // pred_fallthru
          _
        %s179 = sand.u32 %s42, 1
        %s180 = scalar_lea.sflag [#allocation3], %s179
        %s181 = sand.u32 %s42, 1
        %s182 = smul.addr %s181, 64
        %s183 = scalar_lea.vmem [#allocation2], %s182
        %p184 = pneg %p55
        %p185 = pneg %p52
        %p186 = pneg %p76
        %p187 = pneg %p73
        %p188 = pneg %p104
        %p189 = pneg %p101
        %s190 = sand.u32 %s91, 1
        %s191 = scalar_lea.sflag [#allocation4], %s190
        %s192 = sand.u32 %s91, 1
        %s193 = smul.addr %s192, 64
        %s194 = scalar_lea.vmem [#allocation7], %s193
        %s195 = smul.u32 16, %s25
        %s196 = smul.u32 16, %s25
        %v198 = vld [vmem:[%s170] sm:$0xf]
        %v199 = vld [vmem:[%s170 + $0x4] sm:$0xf]
        %v200 = vld [vmem:[%s170 + $0x8] sm:$0xf]
        %v201 = vld [vmem:[%s170 + $0xc] sm:$0xf]
        %v202 = vld [vmem:[%s170 + $0x10] sm:$0xf]
        %v203 = vld [vmem:[%s170 + $0x14] sm:$0xf]
        %v204 = vld [vmem:[%s170 + $0x18] sm:$0xf]
        %v205 = vld [vmem:[%s170 + $0x1c] sm:$0xf]
        %v206 = vld [vmem:[%s170 + $0x20] sm:$0xf]
        %v207 = vld [vmem:[%s170 + $0x24] sm:$0xf]
        %v208 = vld [vmem:[%s170 + $0x28] sm:$0xf]
        %v209 = vld [vmem:[%s170 + $0x2c] sm:$0xf]
        %v210 = vld [vmem:[%s170 + $0x30] sm:$0xf]
        %v211 = vld [vmem:[%s170 + $0x34] sm:$0xf]
        %v212 = vld [vmem:[%s170 + $0x38] sm:$0xf]
        %v213 = vld [vmem:[%s170 + $0x3c] sm:$0xf]
        %v214 = vld [vmem:[#allocation5] sm:$0xf]
        %v215 = vld [vmem:[#allocation5 + $0x4] sm:$0xf]
        %v216 = vld [vmem:[#allocation5 + $0x8] sm:$0xf]
        %v217 = vld [vmem:[#allocation5 + $0xc] sm:$0xf]
        %v218 = vld [vmem:[#allocation5 + $0x10] sm:$0xf]
        %v219 = vld [vmem:[#allocation5 + $0x14] sm:$0xf]
        %v220 = vld [vmem:[#allocation5 + $0x18] sm:$0xf]
        %v221 = vld [vmem:[#allocation5 + $0x1c] sm:$0xf]
        %v222 = vld [vmem:[#allocation5 + $0x20] sm:$0xf]
        %v223 = vld [vmem:[#allocation5 + $0x24] sm:$0xf]
        %v224 = vld [vmem:[#allocation5 + $0x28] sm:$0xf]
        %v225 = vld [vmem:[#allocation5 + $0x2c] sm:$0xf]
        %v226 = vld [vmem:[#allocation5 + $0x30] sm:$0xf]
        %v227 = vld [vmem:[#allocation5 + $0x34] sm:$0xf]
        %v228 = vld [vmem:[#allocation5 + $0x38] sm:$0xf]
        %v229 = vld [vmem:[#allocation5 + $0x3c] sm:$0xf]
        %v246 = vunpack.c.l.b16 %v198
        %v247 = vunpack.c.l.b16 %v199
        %v248 = vunpack.c.l.b16 %v200
        %v249 = vunpack.c.l.b16 %v201
        %v250 = vunpack.c.l.b16 %v202
        %v251 = vunpack.c.l.b16 %v203
        %v252 = vunpack.c.l.b16 %v204
        %v253 = vunpack.c.l.b16 %v205
        %v254 = vunpack.c.l.b16 %v206
        %v255 = vunpack.c.l.b16 %v207
        %v256 = vunpack.c.l.b16 %v208
        %v257 = vunpack.c.l.b16 %v209
        %v258 = vunpack.c.l.b16 %v210
        %v259 = vunpack.c.l.b16 %v211
        %v260 = vunpack.c.l.b16 %v212
        %v261 = vunpack.c.l.b16 %v213
        %v262 = vpack.c.b16 %v247, %v246
        %v263 = vpack.c.b16 %v249, %v248
        %v264 = vpack.c.b16 %v251, %v250
        %v265 = vpack.c.b16 %v253, %v252
        %v266 = vpack.c.b16 %v255, %v254
        %v267 = vpack.c.b16 %v257, %v256
        %v268 = vpack.c.b16 %v259, %v258
        %v269 = vpack.c.b16 %v261, %v260
        %v294 = vunpack.c.l.b16 %v214
        %v295 = vunpack.c.l.b16 %v215
        %v296 = vunpack.c.l.b16 %v216
        %v297 = vunpack.c.l.b16 %v217
        %v298 = vunpack.c.l.b16 %v218
        %v299 = vunpack.c.l.b16 %v219
        %v300 = vunpack.c.l.b16 %v220
        %v301 = vunpack.c.l.b16 %v221
        %v302 = vunpack.c.l.b16 %v222
        %v303 = vunpack.c.l.b16 %v223
        %v304 = vunpack.c.l.b16 %v224
        %v305 = vunpack.c.l.b16 %v225
        %v306 = vunpack.c.l.b16 %v226
        %v307 = vunpack.c.l.b16 %v227
        %v308 = vunpack.c.l.b16 %v228
        %v309 = vunpack.c.l.b16 %v229
        %v310 = vpack.c.b16 %v295, %v294
        %v311 = vpack.c.b16 %v297, %v296
        %v312 = vpack.c.b16 %v299, %v298
        %v313 = vpack.c.b16 %v301, %v300
        %v314 = vpack.c.b16 %v303, %v302
        %v315 = vpack.c.b16 %v305, %v304
        %v316 = vpack.c.b16 %v307, %v306
        %v317 = vpack.c.b16 %v309, %v308
        %326 = vmatprep.subr.bf16.mxu0 0
        %327 = vmatpush1.bf16.msra.mxu0 %v310
        %328 = vmatprep.subr.bf16.mxu0 0
        %329 = vmatpush1.bf16.msra.mxu0 %v311
        %330 = vmatprep.subr.bf16.mxu0 0
        %331 = vmatpush1.bf16.msra.mxu0 %v312
        %332 = vmatprep.subr.bf16.mxu0 0
        %333 = vmatpush1.bf16.msra.mxu0 %v313
        %334 = vmatprep.subr.bf16.mxu0 0
        %335 = vmatpush1.bf16.msra.mxu0 %v314
        %336 = vmatprep.subr.bf16.mxu0 0
        %337 = vmatpush1.bf16.msra.mxu0 %v315
        %338 = vmatprep.subr.bf16.mxu0 0
        %339 = vmatpush1.bf16.msra.mxu0 %v316
        %340 = vmatprep.subr.bf16.mxu0 0
        %341 = vmatpush1.bf16.msra.mxu0 %v317
        %342 = vmatprep.subr.bf16.mxu0 0
        %343 = vmatpush1.bf16.msra.mxu0 0
        %344 = vmatprep.subr.bf16.mxu0 0
        %345 = vmatpush1.bf16.msra.mxu0 0
        %346 = vmatprep.subr.bf16.mxu0 0
        %347 = vmatpush1.bf16.msra.mxu0 0
        %348 = vmatprep.subr.bf16.mxu0 0
        %349 = vmatpush1.bf16.msra.mxu0 0
        %350 = vmatprep.subr.bf16.mxu0 0
        %351 = vmatpush1.bf16.msra.mxu0 0
        %352 = vmatprep.subr.bf16.mxu0 0
        %353 = vmatpush1.bf16.msra.mxu0 0
        %354 = vmatprep.subr.bf16.mxu0 0
        %355 = vmatpush1.bf16.msra.mxu0 0
        %356 = vmatprep.subr.bf16.mxu0 0
        %357 = vmatpush1.bf16.msra.mxu0 0
        %358 = vmatprep.mubr.bf16.mxu0 0
        %359 = vmatmul.mubr.bf16.gmra.mrb[0].mxu0 %v262
        %v360 = vpop.f32.mrb[0].mxu0
        %v361 = vadd.f32 0.0, %v360
        %v362 = vpop.f32.mrb[0].mxu0
        %v363 = vpop.f32.mrb[0].mxu0
        %v364 = vadd.f32 0.0, %v363
        %v365 = vpop.f32.mrb[0].mxu0
        %366 = vmatprep.mubr.bf16.mxu0 0
        %367 = vmatmul.mubr.bf16.gmra.mrb[0].mxu0 %v263
        %v368 = vpop.f32.mrb[0].mxu0
        %v369 = vadd.f32 0.0, %v368
        %v370 = vpop.f32.mrb[0].mxu0
        %v371 = vpop.f32.mrb[0].mxu0
        %v372 = vadd.f32 0.0, %v371
        %v373 = vpop.f32.mrb[0].mxu0
        %374 = vmatprep.mubr.bf16.mxu0 0
        %375 = vmatmul.mubr.bf16.gmra.mrb[0].mxu0 %v264
        %v376 = vpop.f32.mrb[0].mxu0
        %v377 = vadd.f32 0.0, %v376
        %v378 = vpop.f32.mrb[0].mxu0
        %v379 = vpop.f32.mrb[0].mxu0
        %v380 = vadd.f32 0.0, %v379
        %v381 = vpop.f32.mrb[0].mxu0
        %382 = vmatprep.mubr.bf16.mxu0 0
        %383 = vmatmul.mubr.bf16.gmra.mrb[0].mxu0 %v265
        %v384 = vpop.f32.mrb[0].mxu0
        %v385 = vadd.f32 0.0, %v384
        %v386 = vpop.f32.mrb[0].mxu0
        %v387 = vpop.f32.mrb[0].mxu0
        %v388 = vadd.f32 0.0, %v387
        %v389 = vpop.f32.mrb[0].mxu0
        %390 = vmatprep.mubr.bf16.mxu0 0
        %391 = vmatmul.mubr.bf16.gmra.mrb[0].mxu0 %v266
        %v392 = vpop.f32.mrb[0].mxu0
        %v393 = vadd.f32 0.0, %v392
        %v394 = vpop.f32.mrb[0].mxu0
        %v395 = vpop.f32.mrb[0].mxu0
        %v396 = vadd.f32 0.0, %v395
        %v397 = vpop.f32.mrb[0].mxu0
        %398 = vmatprep.mubr.bf16.mxu0 0
        %399 = vmatmul.mubr.bf16.gmra.mrb[0].mxu0 %v267
        %v400 = vpop.f32.mrb[0].mxu0
        %v401 = vadd.f32 0.0, %v400
        %v402 = vpop.f32.mrb[0].mxu0
        %v403 = vpop.f32.mrb[0].mxu0
        %v404 = vadd.f32 0.0, %v403
        %v405 = vpop.f32.mrb[0].mxu0
        %406 = vmatprep.mubr.bf16.mxu0 0
        %407 = vmatmul.mubr.bf16.gmra.mrb[0].mxu0 %v268
        %v408 = vpop.f32.mrb[0].mxu0
        %v409 = vadd.f32 0.0, %v408
        %v410 = vpop.f32.mrb[0].mxu0
        %v411 = vpop.f32.mrb[0].mxu0
        %v412 = vadd.f32 0.0, %v411
        %v413 = vpop.f32.mrb[0].mxu0
        %414 = vmatprep.mubr.bf16.mxu0 0
        %415 = vmatmul.mubr.bf16.gmra.mrb[0].mxu0 %v269
        %v416 = vpop.f32.mrb[0].mxu0
        %v417 = vadd.f32 0.0, %v416
        %v418 = vpop.f32.mrb[0].mxu0
        %v419 = vpop.f32.mrb[0].mxu0
        %v420 = vadd.f32 0.0, %v419
        %v421 = vpop.f32.mrb[0].mxu0
        %422 = vdwg.mxu0
        %v423 = vpack.c.bf16 %v364, %v361
        %v424 = vpack.c.bf16 %v372, %v369
        %v425 = vpack.c.bf16 %v380, %v377
        %v426 = vpack.c.bf16 %v388, %v385
        %v427 = vpack.c.bf16 %v396, %v393
        %v428 = vpack.c.bf16 %v404, %v401
        %v429 = vpack.c.bf16 %v412, %v409
        %v430 = vpack.c.bf16 %v420, %v417
        %v439 = vunpack.c.l.b16 %v423
        %v440 = vunpack.c.h.b16 %v423
        %v441 = vunpack.c.l.b16 %v424
        %v442 = vunpack.c.h.b16 %v424
        %v443 = vunpack.c.l.b16 %v425
        %v444 = vunpack.c.h.b16 %v425
        %v445 = vunpack.c.l.b16 %v426
        %v446 = vunpack.c.h.b16 %v426
        %v447 = vunpack.c.l.b16 %v427
        %v448 = vunpack.c.h.b16 %v427
        %v449 = vunpack.c.l.b16 %v428
        %v450 = vunpack.c.h.b16 %v428
        %v451 = vunpack.c.l.b16 %v429
        %v452 = vunpack.c.h.b16 %v429
        %v453 = vunpack.c.l.b16 %v430
        %v454 = vunpack.c.h.b16 %v430
        %v455 = vpack.c.b16 %v439, %v439
        %v456 = vpack.c.b16 %v440, %v440
        %v457 = vpack.c.b16 %v441, %v441
        %v458 = vpack.c.b16 %v442, %v442
        %v459 = vpack.c.b16 %v443, %v443
        %v460 = vpack.c.b16 %v444, %v444
        %v461 = vpack.c.b16 %v445, %v445
        %v462 = vpack.c.b16 %v446, %v446
        %v463 = vpack.c.b16 %v447, %v447
        %v464 = vpack.c.b16 %v448, %v448
        %v465 = vpack.c.b16 %v449, %v449
        %v466 = vpack.c.b16 %v450, %v450
        %v467 = vpack.c.b16 %v451, %v451
        %v468 = vpack.c.b16 %v452, %v452
        %v469 = vpack.c.b16 %v453, %v453
        %v470 = vpack.c.b16 %v454, %v454
        %487 = vst [vmem:[%s194] sm:$0xf] %v455
        %488 = vst [vmem:[%s194 + $0x4] sm:$0xf] %v456
        %489 = vst [vmem:[%s194 + $0x8] sm:$0xf] %v457
        %490 = vst [vmem:[%s194 + $0xc] sm:$0xf] %v458
        %491 = vst [vmem:[%s194 + $0x10] sm:$0xf] %v459
        %492 = vst [vmem:[%s194 + $0x14] sm:$0xf] %v460
        %493 = vst [vmem:[%s194 + $0x18] sm:$0xf] %v461
        %494 = vst [vmem:[%s194 + $0x1c] sm:$0xf] %v462
        %495 = vst [vmem:[%s194 + $0x20] sm:$0xf] %v463
        %496 = vst [vmem:[%s194 + $0x24] sm:$0xf] %v464
        %497 = vst [vmem:[%s194 + $0x28] sm:$0xf] %v465
        %498 = vst [vmem:[%s194 + $0x2c] sm:$0xf] %v466
        %499 = vst [vmem:[%s194 + $0x30] sm:$0xf] %v467
        %500 = vst [vmem:[%s194 + $0x34] sm:$0xf] %v468
        %501 = vst [vmem:[%s194 + $0x38] sm:$0xf] %v469
        %502 = vst [vmem:[%s194 + $0x3c] sm:$0xf] %v470
        %s503 = sand.u32 %s91, 1
        %s504 = scalar_lea.sflag [#allocation4], %s503
        %s505 = sand.u32 %s91, 1
        %s506 = smul.addr %s505, 64
        %s507 = scalar_lea.vmem [#allocation7], %s506
        // Predicated region
        $region37: #{tpu_custom_call.1} parent=27 // pred_check
          %p508 = pneg %p101
        $region38: #{tpu_custom_call.1} parent=27 // pred_check_branch
          %510 = sbr.rel (%p508) target = $region40
        $region39: #{tpu_custom_call.1} parent=27 // pred_region
          %s511 = smul.u32 16, %s25
          %s513 = ssub.s32 1024, 1024
          %514 = vsyncadd %s504, %s513
          %s515 = smul.addr %s511, 2
          %s516 = sadd.s32 %s24, %s515
          %s517 = smul.addr %s516, 64
          %s518 = scalar_lea.hbm %s2, %s517
          %s519 = sshll.u32 %s507, 4
          %s520 = int_to_ptr.vmem [resolvable:$true] %s519
          %525 = dma.vmem_to_hbm [thread:$0]  %s520, 1024, %s518, %s504, 64, 128, 4
        $region40: #{tpu_custom_call.1} parent=27 // pred_fallthru
          _
      $region28: #{tpu_custom_call.1} parent=5 // pred_fallthru
        _
      %p526 = scmp.le.s32.totalorder 2, %s15
      // Predicated region
      $region41: #{tpu_custom_call.1} parent=5 // pred_check
        %p527 = pneg %p526
      $region42: #{tpu_custom_call.1} parent=5 // pred_check_branch
        %529 = sbr.rel (%p527) target = $region44
      $region43: #{tpu_custom_call.1} parent=5 // pred_region
        %s530 = ssub.s32 %s15, 2
        // Predicated region
        $region45: #{tpu_custom_call.1} parent=43 // pred_check
          %p531 = pneg %p107
        $region46: #{tpu_custom_call.1} parent=43 // pred_check_branch
          %533 = sbr.rel (%p531) target = $region48
        $region47: #{tpu_custom_call.1} parent=43 // pred_region
          %s534 = sand.u32 %s92, 1
          %s535 = scalar_lea.sflag [#allocation4], %s534
          %s536 = sand.u32 %s92, 1
          %s537 = smul.addr %s536, 64
          %s538 = scalar_lea.vmem [#allocation7], %s537
          %539 = dma.done %s535, 1024
        $region48: #{tpu_custom_call.1} parent=43 // pred_fallthru
          _
      $region44: #{tpu_custom_call.1} parent=5 // pred_fallthru
        _
    $region6: #{tpu_custom_call.1} parent=1 // loop_footer
      %s19 = sadd.s32 1, %s15
    $region7: #{tpu_custom_call.1} parent=1 // loop_footer_branch
      %14 = sbr.rel target = $region3
    $region8: #{tpu_custom_call.1} parent=1 // loop_exit
      _
    %540 = vsyncpa [#allocation3], 1
    %s541 = scalar_lea.sflag [#allocation3], 1
    %542 = vsyncpa %s541, 1
    %543 = vsyncpa [#allocation6], 1
    %544 = vsyncpa [#allocation4], 1
    %s545 = scalar_lea.sflag [#allocation4], 1
    %546 = vsyncpa %s545, 1

</llo_original>
